<compile_context>
chip_gen: v5e
topology: v5e:2x2
jax: 0.10.0
libtpu: 0.0.40
codegen_flags: <defaults>
</compile_context>

<pallas_src>
import functools

import jax
import jax.numpy as jnp
from jax.experimental import pallas as pl
from jax.experimental.pallas import tpu as pltpu


def qconv_kernel(params_ref, patchT_ref, wq_ref, biasq_ref, out_ref):
    """Quantized conv-as-matmul tile: int accumulation + fused requant/ReLU/dequant.

    params (SMEM, f32[3]): [0] mult = s_in*s_w/s_out   [1] z_out   [2] s_out
    patchT: (K, TM)   bf16 centered quantized patches (q_x - z_in, exact ints in [-255,255])
    wq:     (Cout, K) bf16 symmetric-int8 weights (exact ints in [-127, 127])
    biasq:  (Cout, 1) f32  = bias / s_out
    out:    (Cout, TM) f32 -- lane-dense (TM a multiple of 128)
    """
    mult = params_ref[0]
    z_out = params_ref[1]
    s_out = params_ref[2]

    # Integer accumulation on the MXU: bf16 operands are exact integers and f32
    # accumulation is exact while 255*127*K < 2^24 (asserted at convert time).
    acc = jnp.dot(wq_ref[...], patchT_ref[...], preferred_element_type=jnp.float32)

    # Requantize to quint8; ReLU is folded into the clip lower bound (== z_out).
    qy = jnp.clip(jnp.round(acc * mult + biasq_ref[...]) + z_out, z_out, 255.0)

    # DeQuantStub.
    out_ref[...] = (qy - z_out) * s_out


def convert_quantized_model(w, b, x_calib):
    """One-time PyTorch-style prepare / calibrate / convert.

    Runs the observers (MinMax input/output, symmetric int8 weight) on calibration data
    and returns static quantized parameters; nothing here runs in the forward path.
    w: [Cout, C, k, k] fp32; b: [Cout] fp32; x_calib: [N, C, H, W] fp32.
    """
    Cout, C, k, _ = w.shape
    pad = k // 2
    K = C * k * k
    # bf16-operand / f32-accumulation reproduces integer accumulation bit-exactly only
    # while |acc| <= 255*127*K < 2^24 (K = 36 here; breaks around K ~ 517).
    assert 255 * 127 * K < 2 ** 24, "K too large for exact bf16/f32-acc integer matmul"

    # Input observer (MinMaxObserver, quint8, affine).
    xmin = jnp.minimum(jnp.min(x_calib), 0.0)
    xmax = jnp.maximum(jnp.max(x_calib), 0.0)
    s_in = jnp.maximum((xmax - xmin) / 255.0, 1e-8)
    z_in = jnp.clip(jnp.round(-xmin / s_in), 0.0, 255.0)

    # Weight observer (symmetric int8); quantized weights are exact ints -> exact bf16.
    s_w = jnp.maximum(jnp.max(jnp.abs(w)) / 127.0, 1e-8)
    wq_mat = jnp.clip(jnp.round(w / s_w), -127.0, 127.0).reshape(Cout, K).astype(jnp.bfloat16)

    # Output observer: calibrate on the fp32 conv+relu output (calibration pass only,
    # never in the forward path).
    y = jax.lax.conv_general_dilated(
        x_calib, w, window_strides=(1, 1), padding=((pad, pad), (pad, pad)),
        dimension_numbers=("NCHW", "OIHW", "NCHW")) + b.reshape(1, -1, 1, 1)
    y = jnp.maximum(y, 0.0)
    ymin = jnp.minimum(jnp.min(y), 0.0)
    ymax = jnp.maximum(jnp.max(y), 0.0)
    s_out = jnp.maximum((ymax - ymin) / 255.0, 1e-8)
    z_out = jnp.clip(jnp.round(-ymin / s_out), 0.0, 255.0)

    # Folded requant constants (computed once; no in-kernel divides).
    # NOTE: f32 multiplier (PyTorch uses double) -> can differ by 1 output LSB at ties.
    mult = s_in * s_w / s_out
    return {
        "inv_s_in": (1.0 / s_in).astype(jnp.float32),
        "z_in": z_in.astype(jnp.float32),
        "wq_mat": wq_mat,                                            # [Cout, K] bf16
        "bias_q": (b / s_out).reshape(Cout, 1).astype(jnp.float32),  # [Cout, 1] f32
        "params": jnp.stack([mult, z_out, s_out]).astype(jnp.float32),
        "k": int(k),
    }


@functools.partial(jax.jit, static_argnames=("k",))
def quantized_model_forward(x, inv_s_in, z_in, wq_mat, bias_q, params, *, k):
    """Forward: QuantStub -> quantized Conv2d(+ReLU) -> DeQuantStub."""
    N, C, H, W = x.shape
    Cout, K = wq_mat.shape
    pad = k // 2

    # --- QuantStub on x (k*k times smaller than the patch matrix), centered so the
    # matmul operand holds exact integers in [-255, 255] -> exact in bf16. ---
    qx = jnp.clip(jnp.round(x * inv_s_in) + z_in, 0.0, 255.0)
    qxc = (qx - z_in).astype(jnp.bfloat16)

    # Zero padding in the centered-quantized domain == real zero padding (0 <-> z_in).
    xq_pad = jnp.pad(qxc, ((0, 0), (0, 0), (pad, pad), (pad, pad)))

    # --- im2col in bf16, built directly as [K, M]: rows (c, ky, kx), cols (n, h, w) ---
    # TODO(synk): at realistic N*H*W fuse this into the kernel (padded input resident in
    # VMEM + k*k shifted pl.ds slices into a scratch tile) to remove the k*k HBM
    # read/write amplification; at this size the whole patch matrix is ~36 KB.
    cols = [xq_pad[:, :, dy:dy + H, dx:dx + W] for dy in range(k) for dx in range(k)]
    patchT = (jnp.stack(cols, axis=2)                 # [N, C, k*k, H, W]
              .transpose(1, 2, 0, 3, 4)               # [C, k*k, N, H, W]
              .reshape(K, N * H * W))                 # [K, M]

    # --- lane-dense, tile-aligned M ---
    M = N * H * W
    MAX_TM = 4096                    # ~0.3 MiB/buffer at K=36 bf16: fits v5e/v6e/v7x
    Mp = ((M + 127) // 128) * 128
    TM = min(Mp, MAX_TM)
    Mp = ((Mp + TM - 1) // TM) * TM
    if Mp != M:
        # Padded columns are zero (== input zero point) and are sliced off below.
        patchT = jnp.pad(patchT, ((0, 0), (0, Mp - M)))
    grid_m = Mp // TM

    # Deeper patch buffering once the pipeline is deep enough (per-tile MXU work is a
    # handful of pushes, so a 2-deep pipeline can expose the patch DMA).
    patch_spec = pl.BlockSpec((K, TM), lambda i: (0, i))
    if grid_m >= 3:
        patch_spec = pl.BlockSpec((K, TM), lambda i: (0, i),
                                  pipeline_mode=pl.Buffered(3))

    cost = pl.CostEstimate(
        flops=2 * Cout * K * Mp,
        transcendentals=0,
        bytes_accessed=K * Mp * 2 + Cout * K * 2 + Cout * 4 + 3 * 4 + Cout * Mp * 4)

    out_t = pl.pallas_call(
        qconv_kernel,
        out_shape=jax.ShapeDtypeStruct((Cout, Mp), jnp.float32),
        grid=(grid_m,),
        in_specs=[
            pl.BlockSpec(memory_space=pltpu.SMEM),           # requant scalars
            patch_spec,                                      # bf16 patches, tiled in M
            pl.BlockSpec((Cout, K), lambda i: (0, 0)),       # bf16 weights (resident)
            pl.BlockSpec((Cout, 1), lambda i: (0, 0)),       # bias / s_out (resident)
        ],
        out_specs=pl.BlockSpec((Cout, TM), lambda i: (0, i)),  # lane-dense output
        # "parallel" lets v7x shard M-tiles across its 2 TensorCores; neutral on
        # single-TC v5e/v6e.  When scaling M further: keep TM large (>=2048 lanes) to
        # amortize v5e's ~0.35 us/step overhead, and raise vmem_limit_bytes with
        # headroom (v7x: 64 MiB physical / 32 MiB scoped default; v5e default: 16 MiB).
        compiler_params=pltpu.CompilerParams(
            dimension_semantics=("parallel",)),
        cost_estimate=cost,
    )(params, patchT, wq_mat, bias_q)

    # [Cout, M] -> NCHW
    return out_t[:, :M].reshape(Cout, N, H, W).transpose(1, 0, 2, 3)


if __name__ == "__main__":
    # TODO(synk): model_fp32 is an arbitrary wrapped module in PyTorch; instantiated
    # here as a single Conv2d(4, 8, 3, padding=1) + ReLU block.
    key = jax.random.PRNGKey(0)
    kx, kw, kb = jax.random.split(key, 3)
    N, C, H, W = 2, 4, 16, 16
    Cout, k = 8, 3

    x = jax.random.normal(kx, (N, C, H, W), dtype=jnp.float32)
    w = jax.random.normal(kw, (Cout, C, k, k), dtype=jnp.float32) * 0.1
    b = jax.random.normal(kb, (Cout,), dtype=jnp.float32) * 0.1

    # One-time prepare/calibrate/convert (hoisted out of the forward path).
    qp = convert_quantized_model(w, b, x)

    y = quantized_model_forward(x, qp["inv_s_in"], qp["z_in"], qp["wq_mat"],
                                qp["bias_q"], qp["params"], k=qp["k"])
    y = jax.block_until_ready(y)
    assert y.shape == (N, Cout, H, W)
    assert bool(jnp.all(jnp.isfinite(y)))

    # Sanity: quantized path should track the fp32 conv+relu within quantization error.
    y_ref = jnp.maximum(
        jax.lax.conv_general_dilated(
            x, w, window_strides=(1, 1), padding=((1, 1), (1, 1)),
            dimension_numbers=("NCHW", "OIHW", "NCHW")) + b.reshape(1, -1, 1, 1),
        0.0)
    err = float(jnp.max(jnp.abs(y - y_ref)))
    assert err < 0.25, f"quantization error too large: {err}"
    print("KERNEL_OK")
</pallas_src>

<mosaic_0001>
module attributes {stable_mosaic.version = 11 : i64} {
  func.func @qconv_kernel(%arg0: i32, %arg1: memref<3xf32, #tpu.memory_space<smem>>, %arg2: memref<36x512xbf16, #tpu.memory_space<vmem>>, %arg3: memref<8x36xbf16, #tpu.memory_space<vmem>>, %arg4: memref<8x1xf32, #tpu.memory_space<vmem>>, %arg5: memref<8x512xf32, #tpu.memory_space<vmem>>) attributes {dimension_semantics = [#tpu.dimension_semantics<parallel>], iteration_bounds = array<i64: 1>, scalar_prefetch = 0 : i64, scratch_operands = 0 : i64, tpu.core_type = #tpu.core_type<tc>, window_params = [{transform_indices = @transform_0, window_bounds = array<i64: 3>}, {transform_indices = @transform_1, window_bounds = array<i64: 36, 512>}, {pipeline_mode = #tpu.pipeline_mode<synchronous>, transform_indices = @transform_2, window_bounds = array<i64: 8, 36>}, {pipeline_mode = #tpu.pipeline_mode<synchronous>, transform_indices = @transform_3, window_bounds = array<i64: 8, 1>}, {transform_indices = @transform_4, window_bounds = array<i64: 8, 512>}]} {
    %c0 = arith.constant 0 : index
    %0 = memref.load %arg1[%c0] : memref<3xf32, #tpu.memory_space<smem>>
    %c1 = arith.constant 1 : index
    %1 = memref.load %arg1[%c1] : memref<3xf32, #tpu.memory_space<smem>>
    %c2 = arith.constant 2 : index
    %2 = memref.load %arg1[%c2] : memref<3xf32, #tpu.memory_space<smem>>
    %c0_0 = arith.constant 0 : index
    %c0_1 = arith.constant 0 : index
    %3 = vector.load %arg3[%c0_0, %c0_1] : memref<8x36xbf16, #tpu.memory_space<vmem>>, vector<8x36xbf16>
    %c0_2 = arith.constant 0 : index
    %c0_3 = arith.constant 0 : index
    %4 = vector.load %arg2[%c0_2, %c0_3] : memref<36x512xbf16, #tpu.memory_space<vmem>>, vector<36x512xbf16>
    %cst = arith.constant dense<0.000000e+00> : vector<8x512xf32>
    %5 = tpu.matmul %3, %4, %cst {dimension_numbers = #tpu.dot_dimension_numbers<[1], [0], [0], [1], [0, 0, 1, 1], [], []>} : vector<8x36xbf16>, vector<36x512xbf16>, vector<8x512xf32> -> vector<8x512xf32>
    %6 = vector.broadcast %0 : f32 to vector<8x512xf32>
    %7 = arith.mulf %5, %6 : vector<8x512xf32>
    %c0_4 = arith.constant 0 : index
    %c0_5 = arith.constant 0 : index
    %8 = vector.load %arg4[%c0_4, %c0_5] : memref<8x1xf32, #tpu.memory_space<vmem>>, vector<8x1xf32>
    %9 = vector.broadcast %8 : vector<8x1xf32> to vector<8x512xf32>
    %10 = arith.addf %7, %9 : vector<8x512xf32>
    %11 = math.roundeven %10 : vector<8x512xf32>
    %12 = vector.broadcast %1 : f32 to vector<8x512xf32>
    %13 = arith.addf %11, %12 : vector<8x512xf32>
    %cst_6 = arith.constant 2.550000e+02 : f32
    %14 = vector.broadcast %1 : f32 to vector<8x512xf32>
    %15 = arith.maximumf %14, %13 : vector<8x512xf32>
    %16 = vector.broadcast %cst_6 : f32 to vector<8x512xf32>
    %17 = arith.minimumf %16, %15 : vector<8x512xf32>
    %18 = vector.broadcast %1 : f32 to vector<8x512xf32>
    %19 = arith.subf %17, %18 : vector<8x512xf32>
    %20 = vector.broadcast %2 : f32 to vector<8x512xf32>
    %21 = arith.mulf %19, %20 : vector<8x512xf32>
    %c0_7 = arith.constant 0 : index
    %c0_8 = arith.constant 0 : index
    %22 = vector.load %arg5[%c0_7, %c0_8] : memref<8x512xf32, #tpu.memory_space<vmem>>, vector<8x512xf32>
    tpu.vector_store %arg5[%c0_7, %c0_8], %21 {strides = array<i32>} : memref<8x512xf32, #tpu.memory_space<vmem>>, vector<8x512xf32>,
    return
  }
  func.func @transform_0(%arg0: i32) -> i32 {
    %c0_i32 = arith.constant 0 : i32
    %c0_i32_0 = arith.constant 0 : i32
    return %c0_i32 : i32
  }
  func.func @transform_1(%arg0: i32) -> (i32, i32) {
    %c0_i32 = arith.constant 0 : i32
    %c0_i32_0 = arith.constant 0 : i32
    return %c0_i32, %arg0 : i32, i32
  }
  func.func @transform_2(%arg0: i32) -> (i32, i32) {
    %c0_i32 = arith.constant 0 : i32
    %c0_i32_0 = arith.constant 0 : i32
    %c0_i32_1 = arith.constant 0 : i32
    return %c0_i32, %c0_i32_0 : i32, i32
  }
  func.func @transform_3(%arg0: i32) -> (i32, i32) {
    %c0_i32 = arith.constant 0 : i32
    %c0_i32_0 = arith.constant 0 : i32
    %c0_i32_1 = arith.constant 0 : i32
    return %c0_i32, %c0_i32_0 : i32, i32
  }
  func.func @transform_4(%arg0: i32) -> (i32, i32) {
    %c0_i32 = arith.constant 0 : i32
    %c0_i32_0 = arith.constant 0 : i32
    return %c0_i32, %arg0 : i32, i32
  }
}

</mosaic_0001>

<llo_original>
// kernel: quantized_model_forward.1
$region0: #{quantized_model_forward.1}
  #allocation0 [shape = 'u32[]', space=smem, size = 0x4, offset = 0x4, fixed_abs, tag = 'smem constant byte address 0x4 - core index']
  #allocation1 [shape = 'u32[72,128]{1,0:T(1,128)}', space=vmem, size = 0x9000, scoped, tag = 'internal scratch']
  %s0 = inlined_call_operand.vmem [shape: f32[3], index: 0, kind: input, shape index: {}]
  %s1 = inlined_call_operand.vmem [shape: bf16[36,512], index: 1, kind: input, shape index: {}]
  %s2 = inlined_call_operand.vmem [shape: bf16[8,36], index: 2, kind: input, shape index: {}]
  %s3 = inlined_call_operand.vmem [shape: f32[8,1], index: 3, kind: input, shape index: {}]
  %s4 = inlined_call_operand.vmem [shape: f32[8,512], index: 4, kind: output, shape index: {}]
  %s5 = sld [smem:[#allocation0]]
  $region30: #{quantized_model_forward.1} parent=0
    _
  %s7 = ssub.s32 1, %s5
  %s8 = scalar_select 0, %s7, %s5
  $region1: #{quantized_model_forward.1} parent=0
    #allocation2 [shape = 'u8[512]{0}', space=smem, size = 0x200, scoped, tag = 'input window, operand 0, single buffered']
    #allocation3 [shape = 's32[1]{0}', space=sflag, size = 0x4, scoped, tag = 'scoped memory for quantized_model_forward.1']
    %9 = vsyncpa [#allocation3], 0
    // Predicated region
    $region2: #{quantized_model_forward.1} parent=1 // pred_check
      _
    $region3: #{quantized_model_forward.1} parent=1 // pred_check_branch
      %11 = sbr.rel (0) target = $region5
    $region4: #{quantized_model_forward.1} parent=1 // pred_region
      %13 = vsyncadd [#allocation3], 0
      %s15 = sshll.u32 %s0, 4
      %s16 = int_to_ptr.vmem [resolvable:$true] %s15
      %18 = dma.vmem_to_smem %s16, 16, [#allocation2], [#allocation3]
    $region5: #{quantized_model_forward.1} parent=1 // pred_fallthru
      _
    // Predicated region
    $region6: #{quantized_model_forward.1} parent=1 // pred_check
      _
    $region7: #{quantized_model_forward.1} parent=1 // pred_check_branch
      %20 = sbr.rel (0) target = $region9
    $region8: #{quantized_model_forward.1} parent=1 // pred_region
      _
    $region9: #{quantized_model_forward.1} parent=1 // pred_fallthru
      _
    // Predicated region
    $region10: #{quantized_model_forward.1} parent=1 // pred_check
      _
    $region11: #{quantized_model_forward.1} parent=1 // pred_check_branch
      %22 = sbr.rel (0) target = $region13
    $region12: #{quantized_model_forward.1} parent=1 // pred_region
      _
    $region13: #{quantized_model_forward.1} parent=1 // pred_fallthru
      _
    // Predicated region
    $region14: #{quantized_model_forward.1} parent=1 // pred_check
      _
    $region15: #{quantized_model_forward.1} parent=1 // pred_check_branch
      %24 = sbr.rel (0) target = $region17
    $region16: #{quantized_model_forward.1} parent=1 // pred_region
      _
    $region17: #{quantized_model_forward.1} parent=1 // pred_fallthru
      _
    // Predicated region
    $region18: #{quantized_model_forward.1} parent=1 // pred_check
      _
    $region19: #{quantized_model_forward.1} parent=1 // pred_check_branch
      %26 = sbr.rel (0) target = $region21
    $region20: #{quantized_model_forward.1} parent=1 // pred_region
      %28 = dma.done [#allocation3], 16
    $region21: #{quantized_model_forward.1} parent=1 // pred_fallthru
      _
    %29 = sfence
    %s31 = sld [smem:[#allocation2]]
    %s32 = sld [smem:[#allocation2 + $0x1]]
    %s33 = sld [smem:[#allocation2 + $0x2]]
    %v34 = vld [vmem:[%s2] sm:$0xf]
    %v35 = vld [vmem:[%s1] sm:$0xff]
    %v36 = vld [vmem:[%s1 + $0x8] sm:$0xff]
    %v37 = vld [vmem:[%s1 + $0x10] sm:$0xff]
    %v38 = vld [vmem:[%s1 + $0x18] sm:$0xff]
    %v39 = vld [vmem:[%s1 + $0x20] sm:$0xff]
    %v40 = vld [vmem:[%s1 + $0x28] sm:$0xff]
    %v41 = vld [vmem:[%s1 + $0x30] sm:$0xff]
    %v42 = vld [vmem:[%s1 + $0x38] sm:$0xff]
    %v43 = vld [vmem:[%s1 + $0x40] sm:$0x33]
    %v44 = vld [vmem:[%s1 + $0x48] sm:$0x33]
    %v55 = vunpack.c.l.b16 %v35
    %v56 = vunpack.c.h.b16 %v35
    %v57 = vunpack.c.l.b16 %v36
    %v58 = vunpack.c.h.b16 %v36
    %v59 = vunpack.c.l.b16 %v37
    %v60 = vunpack.c.h.b16 %v37
    %v61 = vunpack.c.l.b16 %v38
    %v62 = vunpack.c.h.b16 %v38
    %v63 = vunpack.c.l.b16 %v39
    %v64 = vunpack.c.h.b16 %v39
    %v65 = vunpack.c.l.b16 %v40
    %v66 = vunpack.c.h.b16 %v40
    %v67 = vunpack.c.l.b16 %v41
    %v68 = vunpack.c.h.b16 %v41
    %v69 = vunpack.c.l.b16 %v42
    %v70 = vunpack.c.h.b16 %v42
    %v71 = vunpack.c.l.b16 %v43
    %v72 = vunpack.c.h.b16 %v43
    %v73 = vunpack.c.l.b16 %v44
    %v74 = vunpack.c.h.b16 %v44
    %v75 = vpack.c.b16 %v59, %v55
    %v76 = vpack.c.b16 %v60, %v56
    %v77 = vpack.c.b16 %v61, %v57
    %v78 = vpack.c.b16 %v62, %v58
    %v79 = vpack.c.b16 %v67, %v63
    %v80 = vpack.c.b16 %v68, %v64
    %v81 = vpack.c.b16 %v69, %v65
    %v82 = vpack.c.b16 %v70, %v66
    %v83 = vpack.c.b16 %v71, %v71
    %v84 = vpack.c.b16 %v72, %v72
    %v85 = vpack.c.b16 %v73, %v73
    %v86 = vpack.c.b16 %v74, %v74
    %vm95 = vcmask 293888
    %v97 = vsel %vm95, %v34, 0
    %vm99 = vcmask 1041408
    %v101 = vsel %vm99, %v83, 0
    %v104 = vsel %vm99, %v84, 0
    %v107 = vsel %vm99, %v85, 0
    %v110 = vsel %vm99, %v86, 0
    %112 = vmatpush.bf16.msra.mxu0 0
    %113 = vmatpush.bf16.msra.mxu0 0
    %114 = vmatpush.bf16.msra.mxu0 0
    %115 = vmatpush.bf16.msra.mxu0 0
    %116 = vmatpush.bf16.msra.mxu0 0
    %117 = vmatpush.bf16.msra.mxu0 %v101
    %118 = vmatpush.bf16.msra.mxu0 %v79
    %119 = vmatpush.bf16.msra.mxu0 %v75
    %120 = vmatmul.bf16.gmra.mxu0 %v97
    %v121 = vpop.f32.mrf.mxu0
    %v122 = vadd.f32 0.0, %v121
    %v123 = vpop.f32.mrf.mxu0
    %124 = vdwg.mxu0
    %125 = vmatpush.bf16.msra.mxu0 0
    %126 = vmatpush.bf16.msra.mxu0 0
    %127 = vmatpush.bf16.msra.mxu0 0
    %128 = vmatpush.bf16.msra.mxu0 0
    %129 = vmatpush.bf16.msra.mxu0 0
    %130 = vmatpush.bf16.msra.mxu0 %v104
    %131 = vmatpush.bf16.msra.mxu0 %v80
    %132 = vmatpush.bf16.msra.mxu0 %v76
    %133 = vmatmul.bf16.gmra.mxu0 %v97
    %v134 = vpop.f32.mrf.mxu0
    %v135 = vadd.f32 0.0, %v134
    %v136 = vpop.f32.mrf.mxu0
    %137 = vdwg.mxu0
    %138 = vmatpush.bf16.msra.mxu0 0
    %139 = vmatpush.bf16.msra.mxu0 0
    %140 = vmatpush.bf16.msra.mxu0 0
    %141 = vmatpush.bf16.msra.mxu0 0
    %142 = vmatpush.bf16.msra.mxu0 0
    %143 = vmatpush.bf16.msra.mxu0 %v107
    %144 = vmatpush.bf16.msra.mxu0 %v81
    %145 = vmatpush.bf16.msra.mxu0 %v77
    %146 = vmatmul.bf16.gmra.mxu0 %v97
    %v147 = vpop.f32.mrf.mxu0
    %v148 = vadd.f32 0.0, %v147
    %v149 = vpop.f32.mrf.mxu0
    %150 = vdwg.mxu0
    %151 = vmatpush.bf16.msra.mxu0 0
    %152 = vmatpush.bf16.msra.mxu0 0
    %153 = vmatpush.bf16.msra.mxu0 0
    %154 = vmatpush.bf16.msra.mxu0 0
    %155 = vmatpush.bf16.msra.mxu0 0
    %156 = vmatpush.bf16.msra.mxu0 %v110
    %157 = vmatpush.bf16.msra.mxu0 %v82
    %158 = vmatpush.bf16.msra.mxu0 %v78
    %159 = vmatmul.bf16.gmra.mxu0 %v97
    %v160 = vpop.f32.mrf.mxu0
    %v161 = vadd.f32 0.0, %v160
    %v162 = vpop.f32.mrf.mxu0
    %163 = vdwg.mxu0
    %v164 = vstv %s31
    %v165 = vmul.f32 %v122, %v164
    %v166 = vmul.f32 %v135, %v164
    %v167 = vmul.f32 %v148, %v164
    %v168 = vmul.f32 %v161, %v164
    %v169 = vld [vmem:[%s3] sm:$0xff]
    %171 = vset.pattern.permute.xlu0 0
    %172 = vperm.xlu0 %171, %v169
    %v173 = vpop.permute.xlu0 %172
    %v175 = vadd.f32 %v165, %v173
    %v176 = vadd.f32 %v166, %v173
    %v177 = vadd.f32 %v167, %v173
    %v178 = vadd.f32 %v168, %v173
    %v179 = vround.ne.pseudo %v175
    %v180 = vround.ne.pseudo %v176
    %v181 = vround.ne.pseudo %v177
    %v182 = vround.ne.pseudo %v178
    %v183 = vstv %s32
    %v184 = vadd.f32 %v179, %v183
    %v185 = vadd.f32 %v180, %v183
    %v186 = vadd.f32 %v181, %v183
    %v187 = vadd.f32 %v182, %v183
    %v188 = vmax.f32 %v183, %v184
    %v189 = vmax.f32 %v183, %v185
    %v190 = vmax.f32 %v183, %v186
    %v191 = vmax.f32 %v183, %v187
    %v192 = vmin.f32 %v188, 255.0
    %v193 = vmin.f32 %v189, 255.0
    %v194 = vmin.f32 %v190, 255.0
    %v195 = vmin.f32 %v191, 255.0
    %v196 = vsub.f32 %v192, %v183
    %v197 = vsub.f32 %v193, %v183
    %v198 = vsub.f32 %v194, %v183
    %v199 = vsub.f32 %v195, %v183
    %v200 = vstv %s33
    %v201 = vmul.f32 %v196, %v200
    %v202 = vmul.f32 %v197, %v200
    %v203 = vmul.f32 %v198, %v200
    %v204 = vmul.f32 %v199, %v200
    %205 = vst [vmem:[%s4] sm:$0xff] %v201
    %206 = vst [vmem:[%s4 + $0x8] sm:$0xff] %v202
    %207 = vst [vmem:[%s4 + $0x10] sm:$0xff] %v203
    %208 = vst [vmem:[%s4 + $0x18] sm:$0xff] %v204
    // Predicated region
    $region22: #{quantized_model_forward.1} parent=1 // pred_check
      _
    $region23: #{quantized_model_forward.1} parent=1 // pred_check_branch
      %210 = sbr.rel (0) target = $region25
    $region24: #{quantized_model_forward.1} parent=1 // pred_region
      _
    $region25: #{quantized_model_forward.1} parent=1 // pred_fallthru
      _
    // Predicated region
    $region26: #{quantized_model_forward.1} parent=1 // pred_check
      _
    $region27: #{quantized_model_forward.1} parent=1 // pred_check_branch
      %212 = sbr.rel (0) target = $region29
    $region28: #{quantized_model_forward.1} parent=1 // pred_region
      _
    $region29: #{quantized_model_forward.1} parent=1 // pred_fallthru
      _
    %213 = vsyncpa [#allocation3], 1

</llo_original>
